<compile_context>
chip_gen: v7x
topology: tpu7x:2x2x1
jax: 0.10.0
libtpu: 0.0.40
codegen_flags: <defaults>
</compile_context>

<pallas_src>
import functools
import math

import jax
import jax.numpy as jnp
from jax import lax
from jax.experimental import pallas as pl
from jax.experimental.pallas import tpu as pltpu


def _gather_rows_kernel(idx_ref, count_ref, x_hbm, out_hbm, vbuf, in_sems,
                        out_sems, *, rows_per_block):
    """Count-bounded row gather, HBM -> VMEM staging -> HBM.

    idx_ref:   SMEM (N,) int32, scalar prefetch: compacted source-row indices.
    count_ref: SMEM (1,) int32, scalar prefetch: number of valid rows.
    x_hbm:     ANY  (N, D): source rows (stay in HBM, gathered per row).
    out_hbm:   ANY  (N, D): destination (only rows [0, count) are written).
    vbuf:      VMEM (R, D): staging buffer; up to R rows in flight.
    in_sems / out_sems: (R,) DMA semaphores (one per in-flight row).
    """
    blk = pl.program_id(0)
    start = blk * rows_per_block
    count = count_ref[0]
    # Rows of this block that are actually selected (count-bounded work).
    n_valid = jnp.clip(count - start, 0, rows_per_block)

    def in_copy(r):
        src_row = idx_ref[start + r]
        return pltpu.make_async_copy(
            x_hbm.at[pl.ds(src_row, 1), :],
            vbuf.at[pl.ds(r, 1), :],
            in_sems.at[r])

    def out_copy(r):
        return pltpu.make_async_copy(
            vbuf.at[pl.ds(r, 1), :],
            out_hbm.at[pl.ds(start + r, 1), :],
            out_sems.at[r])

    # Stage 1: launch every gather DMA for this block (up to R in flight).
    def _issue_in(r, carry):
        in_copy(r).start()
        return carry

    lax.fori_loop(0, n_valid, _issue_in, 0)

    # Stage 2: as each gathered row lands, stream it back out to its output row.
    def _stream_out(r, carry):
        in_copy(r).wait()
        out_copy(r).start()
        return carry

    lax.fori_loop(0, n_valid, _stream_out, 0)

    # Stage 3: drain the write-backs before this (parallel) grid step retires.
    def _drain(r, carry):
        out_copy(r).wait()
        return carry

    lax.fori_loop(0, n_valid, _drain, 0)


def _rows_per_block(n_rows, row_bytes):
    """Rows gathered (and DMAs kept in flight) per grid step.

    Targets ~512 KiB of payload per step to amortize per-step overhead, but
    caps the in-flight DMA / semaphore count at 32 and never exceeds N rows.
    The resulting VMEM staging footprint stays tiny even on v7x (64 MiB VMEM).
    """
    max_inflight = 32
    by_bytes = (512 * 1024) // max(row_bytes, 1)
    return int(max(1, min(max_inflight, n_rows, by_bytes)))


def split_streams(x, t, t_cur):
    """Pallas equivalent of SplitStreams.forward(x, t, t_cur).

    Returns (x_selected, idx, count).  x_selected[:count] and idx[:count]
    reproduce the PyTorch result; rows/entries >= count are padding (idx holds
    -1 there; x_selected rows there are unspecified and never written).
    """
    n = x.shape[0]
    d = int(math.prod(x.shape[1:])) if x.ndim > 1 else 1

    t_flat = jnp.asarray(t).reshape(-1)
    assert t_flat.shape[0] == n, (
        f"t has {t_flat.shape[0]} entries but x has {n} rows")
    # Compare in the promoted dtype of (t, t_cur), like torch does — do NOT
    # truncate a floating-point t to int before the equality test.
    mask = t_flat == jnp.asarray(t_cur)

    count = jnp.sum(mask).astype(jnp.int32)
    pos = jnp.arange(n, dtype=jnp.int32)
    # Linear (cumsum + scatter) stable compaction: gather_idx[k] = original
    # index of the k-th selected row, for k < count.  No device-side sort.
    ranks = jnp.cumsum(mask.astype(jnp.int32)) - 1
    scatter_to = jnp.where(mask, ranks, n)  # index n is out of bounds -> dropped
    gather_idx = jnp.zeros((n,), jnp.int32).at[scatter_to].set(pos, mode="drop")
    out_idx = jnp.where(pos < count, gather_idx, jnp.int32(-1))

    x2 = x.reshape(n, d)  # free row-major view; no padding pass
    rows_per_block = _rows_per_block(n, d * x2.dtype.itemsize)
    num_blocks = pl.cdiv(n, rows_per_block)

    kernel = functools.partial(_gather_rows_kernel,
                               rows_per_block=rows_per_block)
    out2 = pl.pallas_call(
        kernel,
        out_shape=jax.ShapeDtypeStruct((n, d), x2.dtype),
        grid_spec=pltpu.PrefetchScalarGridSpec(
            num_scalar_prefetch=2,
            grid=(num_blocks,),
            in_specs=[pl.BlockSpec(memory_space=pl.ANY)],
            out_specs=pl.BlockSpec(memory_space=pl.ANY),
            scratch_shapes=[
                pltpu.VMEM((rows_per_block, d), x2.dtype),
                pltpu.SemaphoreType.DMA((rows_per_block,)),
                pltpu.SemaphoreType.DMA((rows_per_block,)),
            ]),
        compiler_params=pltpu.CompilerParams(
            dimension_semantics=("parallel",)),
    )(gather_idx, count.reshape(1), x2)

    out_x = out2.reshape(x.shape)
    # TODO(synk): torch's boolean x[index_position] has a dynamic output
    # shape; the padded fixed-shape result + `count` stands in for it.
    return out_x, out_idx, count


if __name__ == "__main__":
    key = jax.random.PRNGKey(0)
    kx, kt = jax.random.split(key)

    # x is indexed along dim 0 by positions where t == t_cur, so t has one
    # entry per row of x.
    N, C, H, W = 8, 4, 16, 16
    x = jax.random.normal(kx, (N, C, H, W), dtype=jnp.float32)
    t = jax.random.randint(kt, (N,), 0, 3, dtype=jnp.int32)
    t_cur = 1

    out_x, out_idx, cnt = split_streams(x, t, t_cur)
    jax.block_until_ready((out_x, out_idx, cnt))

    # Pure-JAX reference of the PyTorch semantics.
    ref_idx = jnp.nonzero(t.reshape(-1) == t_cur)[0]
    ref_x = x[ref_idx]

    k = int(cnt)
    assert k == ref_idx.shape[0], (k, ref_idx.shape)
    assert jnp.array_equal(out_idx[:k], ref_idx.astype(jnp.int32))
    assert jnp.allclose(out_x[:k], ref_x)

    print("KERNEL_OK")
</pallas_src>

<mosaic_0001>
module attributes {stable_mosaic.version = 11 : i64} {
  func.func @_gather_rows_kernel(%arg0: i32, %arg1: memref<8xi32, #tpu.memory_space<smem>>, %arg2: memref<1xi32, #tpu.memory_space<smem>>, %arg3: memref<8x1024xf32, #tpu.memory_space<any>>, %arg4: memref<8x1024xf32, #tpu.memory_space<any>>, %arg5: memref<8x1024xf32, #tpu.memory_space<vmem>>, %arg6: memref<8x!tpu.dma_semaphore, #tpu.memory_space<semaphore_mem>>, %arg7: memref<8x!tpu.dma_semaphore, #tpu.memory_space<semaphore_mem>>) attributes {dimension_semantics = [#tpu.dimension_semantics<parallel>], iteration_bounds = array<i64: 1>, scalar_prefetch = 2 : i64, scratch_operands = 3 : i64, tpu.core_type = #tpu.core_type<tc>, window_params = [{}, {}]} {
    %c8_i32 = arith.constant 8 : i32
    %0 = arith.muli %arg0, %c8_i32 : i32
    %c0 = arith.constant 0 : index
    %1 = memref.load %arg2[%c0] : memref<1xi32, #tpu.memory_space<smem>>
    %2 = arith.subi %1, %0 : i32
    %c0_i32 = arith.constant 0 : i32
    %c8_i32_0 = arith.constant 8 : i32
    %3 = arith.maxsi %c0_i32, %2 : i32
    %4 = arith.minsi %c8_i32_0, %3 : i32
    %c0_i32_1 = arith.constant 0 : i32
    %c0_i32_2 = arith.constant 0 : i32
    %5 = arith.subi %4, %c0_i32_2 : i32
    %6 = arith.addi %c0_i32_2, %5 : i32
    %c1_i32 = arith.constant 1 : i32
    scf.for %arg8 = %c0_i32_2 to %6 step %c1_i32  : i32 {
      %11 = arith.addi %0, %arg8 : i32
      %12 = arith.index_cast %11 : i32 to index
      %13 = memref.load %arg1[%12] : memref<8xi32, #tpu.memory_space<smem>>
      %c0_i32_9 = arith.constant 0 : i32
      %14 = tpu.memref_slice %arg3[%13, %c0_i32_9] : memref<8x1024xf32, #tpu.memory_space<any>> -> memref<1x1024xf32, #tpu.memory_space<any>>
      %c0_i32_10 = arith.constant 0 : i32
      %15 = tpu.memref_slice %arg5[%arg8, %c0_i32_10] : memref<8x1024xf32, #tpu.memory_space<vmem>> -> memref<1x1024xf32, #tpu.memory_space<vmem>>
      %16 = tpu.memref_slice %arg6[%arg8] : memref<8x!tpu.dma_semaphore, #tpu.memory_space<semaphore_mem>> -> memref<1x!tpu.dma_semaphore, #tpu.memory_space<semaphore_mem>>
      %17 = tpu.memref_squeeze %16 : memref<1x!tpu.dma_semaphore, #tpu.memory_space<semaphore_mem>> -> memref<!tpu.dma_semaphore, #tpu.memory_space<semaphore_mem>>
      tpu.enqueue_dma source(%14 : memref<1x1024xf32, #tpu.memory_space<any>>) target(%15 : memref<1x1024xf32, #tpu.memory_space<vmem>>) target_semaphore(%17 : memref<!tpu.dma_semaphore, #tpu.memory_space<semaphore_mem>>)
    }
    %c0_i32_3 = arith.constant 0 : i32
    %c0_i32_4 = arith.constant 0 : i32
    %7 = arith.subi %4, %c0_i32_4 : i32
    %8 = arith.addi %c0_i32_4, %7 : i32
    %c1_i32_5 = arith.constant 1 : i32
    scf.for %arg8 = %c0_i32_4 to %8 step %c1_i32_5  : i32 {
      %11 = arith.addi %0, %arg8 : i32
      %12 = arith.index_cast %11 : i32 to index
      %13 = memref.load %arg1[%12] : memref<8xi32, #tpu.memory_space<smem>>
      %c0_i32_9 = arith.constant 0 : i32
      %14 = tpu.memref_slice %arg3[%13, %c0_i32_9] : memref<8x1024xf32, #tpu.memory_space<any>> -> memref<1x1024xf32, #tpu.memory_space<any>>
      %c0_i32_10 = arith.constant 0 : i32
      %15 = tpu.memref_slice %arg5[%arg8, %c0_i32_10] : memref<8x1024xf32, #tpu.memory_space<vmem>> -> memref<1x1024xf32, #tpu.memory_space<vmem>>
      %16 = tpu.memref_slice %arg6[%arg8] : memref<8x!tpu.dma_semaphore, #tpu.memory_space<semaphore_mem>> -> memref<1x!tpu.dma_semaphore, #tpu.memory_space<semaphore_mem>>
      %17 = tpu.memref_squeeze %16 : memref<1x!tpu.dma_semaphore, #tpu.memory_space<semaphore_mem>> -> memref<!tpu.dma_semaphore, #tpu.memory_space<semaphore_mem>>
      tpu.wait_dma2 semaphore(%17 : memref<!tpu.dma_semaphore, #tpu.memory_space<semaphore_mem>>) src(%14 : memref<1x1024xf32, #tpu.memory_space<any>>) dst(%15 : memref<1x1024xf32, #tpu.memory_space<vmem>>)
      %18 = arith.addi %0, %arg8 : i32
      %c0_i32_11 = arith.constant 0 : i32
      %19 = tpu.memref_slice %arg5[%arg8, %c0_i32_11] : memref<8x1024xf32, #tpu.memory_space<vmem>> -> memref<1x1024xf32, #tpu.memory_space<vmem>>
      %c0_i32_12 = arith.constant 0 : i32
      %20 = tpu.memref_slice %arg4[%18, %c0_i32_12] : memref<8x1024xf32, #tpu.memory_space<any>> -> memref<1x1024xf32, #tpu.memory_space<any>>
      %21 = tpu.memref_slice %arg7[%arg8] : memref<8x!tpu.dma_semaphore, #tpu.memory_space<semaphore_mem>> -> memref<1x!tpu.dma_semaphore, #tpu.memory_space<semaphore_mem>>
      %22 = tpu.memref_squeeze %21 : memref<1x!tpu.dma_semaphore, #tpu.memory_space<semaphore_mem>> -> memref<!tpu.dma_semaphore, #tpu.memory_space<semaphore_mem>>
      tpu.enqueue_dma source(%19 : memref<1x1024xf32, #tpu.memory_space<vmem>>) target(%20 : memref<1x1024xf32, #tpu.memory_space<any>>) target_semaphore(%22 : memref<!tpu.dma_semaphore, #tpu.memory_space<semaphore_mem>>)
    }
    %c0_i32_6 = arith.constant 0 : i32
    %c0_i32_7 = arith.constant 0 : i32
    %9 = arith.subi %4, %c0_i32_7 : i32
    %10 = arith.addi %c0_i32_7, %9 : i32
    %c1_i32_8 = arith.constant 1 : i32
    scf.for %arg8 = %c0_i32_7 to %10 step %c1_i32_8  : i32 {
      %11 = arith.addi %0, %arg8 : i32
      %c0_i32_9 = arith.constant 0 : i32
      %12 = tpu.memref_slice %arg5[%arg8, %c0_i32_9] : memref<8x1024xf32, #tpu.memory_space<vmem>> -> memref<1x1024xf32, #tpu.memory_space<vmem>>
      %c0_i32_10 = arith.constant 0 : i32
      %13 = tpu.memref_slice %arg4[%11, %c0_i32_10] : memref<8x1024xf32, #tpu.memory_space<any>> -> memref<1x1024xf32, #tpu.memory_space<any>>
      %14 = tpu.memref_slice %arg7[%arg8] : memref<8x!tpu.dma_semaphore, #tpu.memory_space<semaphore_mem>> -> memref<1x!tpu.dma_semaphore, #tpu.memory_space<semaphore_mem>>
      %15 = tpu.memref_squeeze %14 : memref<1x!tpu.dma_semaphore, #tpu.memory_space<semaphore_mem>> -> memref<!tpu.dma_semaphore, #tpu.memory_space<semaphore_mem>>
      tpu.wait_dma2 semaphore(%15 : memref<!tpu.dma_semaphore, #tpu.memory_space<semaphore_mem>>) src(%12 : memref<1x1024xf32, #tpu.memory_space<vmem>>) dst(%13 : memref<1x1024xf32, #tpu.memory_space<any>>)
    }
    return
  }
}

</mosaic_0001>

<llo_original>
// kernel: tpu_custom_call.1
$region0: #{tpu_custom_call.1}
  #allocation0 [shape = 'u32[]', space=smem, size = 0x4, offset = 0x4, fixed_abs, tag = 'smem constant byte address 0x4 - core index']
  #allocation1 [shape = 'u32[144,128]{1,0:T(1,128)}', space=vmem, size = 0x12000, scoped, tag = 'internal scratch']
  #allocation2 [shape = 'f32[8,1024]{1,0:T(8,128)}', space=vmem, size = 0x8000, scoped, tag = 'scratch operand']
  #allocation3 [shape = 's32[8]{0}', space=sflag, size = 0x20, scoped, tag = 'scratch operand']
  #allocation4 [shape = 's32[8]{0}', space=sflag, size = 0x20, scoped, tag = 'scratch operand']
  #allocation5 [shape = 's32[1]{0}', space=sflag, size = 0x4, scoped, tag = 'scoped memory for tpu_custom_call.1']
  #allocation6 [shape = 'u8[512]{0}', space=smem, size = 0x200, scoped, tag = 'prefetched SMEM operand 0']
  #allocation7 [shape = 's32[1]{0:T(128)S(6)}', space=smem, size = 0x200, scoped, tag = 'prefetched SMEM operand 1']
  #allocation8 [shape = 's32[]', space=sflag, size = 0x4, offset = 0, fixed_abs, tag = 'sflag constant byte address 0x0 - dummy sync flag']
  #allocation9 [shape = 's32[]', space=sflag, size = 0x4, offset = 0, fixed_abs, tag = 'sflag constant byte address 0x0 - dummy sync flag']
  %s0 = inlined_call_operand.vmem [shape: s32[8], index: 0, kind: input, shape index: {}]
  %s1 = inlined_call_operand.<no memory space> [shape: s32[1], index: 1, kind: input, shape index: {}]
  %s2 = inlined_call_operand.hbm [shape: f32[8,1024], index: 2, kind: input, shape index: {}]
  %s3 = inlined_call_operand.hbm [shape: f32[8,1024], index: 3, kind: output, shape index: {}]
  %s4 = sld [smem:[#allocation0]]
  $region23: #{tpu_custom_call.1} parent=0
    _
  %s6 = ssub.s32 1, %s4
  %s7 = scalar_select 0, %s6, %s4
  %s8 = sshll.u32 %s0, 4
  %s9 = int_to_ptr.vmem [resolvable:$true] %s8
  %11 = dma.vmem_to_smem %s9, 16, [#allocation6], [#allocation5]
  %12 = sst [smem:[#allocation7]] %s1
  %13 = dma.done [#allocation5], 16
  %14 = sfence
  %s15 = smul.u32 0, 8
  %s16 = sld [smem:[#allocation7]]
  %s17 = ssub.s32 %s16, %s15
  %p18 = scmp.gt.s32.totalorder %s17, 0
  %s19 = scalar_select %p18, %s17, 0
  %p20 = scmp.lt.s32.totalorder %s19, 8
  %s21 = scalar_select %p20, %s19, 8
  // While loop
  $region2: #{tpu_custom_call.1} parent=0 // loop_pre_header
    _
  $region3: #{tpu_custom_call.1} parent=0 // loop_header
    %s23 = sphi 0, %s25
    %p24 = scmp.ge.s32.totalorder %s23, %s21
  $region4: #{tpu_custom_call.1} parent=0 // loop_header_branch
    %27 = sbr.rel (%p24) target = $region8
  $region5: #{tpu_custom_call.1} parent=0 // loop_body
    %s28 = sadd.s32 %s15, %s23
    %s29 = sld [smem:[#allocation6 + %s28]]
    %s30 = sshrl.u32 %s29, 3
    %s31 = sand.u32 %s29, 7
    %s32 = smul.u32 %s30, 64
    %s33 = sadd.s32 %s31, %s32
    %s34 = smul.addr %s33, 16
    %s35 = scalar_lea.hbm %s2, %s34
    %s36 = sshrl.u32 %s23, 3
    %s37 = sand.u32 %s23, 7
    %s38 = smul.u32 %s36, 64
    %s39 = sadd.s32 %s37, %s38
    %s40 = scalar_lea.vmem [#allocation2], %s39
    %s41 = scalar_lea.sflag [#allocation3], %s23
    %s43 = sshll.u32 %s40, 4
    %s44 = int_to_ptr.vmem [resolvable:$true] %s43
    %46 = dma.hbm_to_vmem [thread:$0]  %s35, 128, %s44, %s41, 128, 128, 1
  $region6: #{tpu_custom_call.1} parent=0 // loop_footer
    %s25 = sadd.s32 %s23, 1
  $region7: #{tpu_custom_call.1} parent=0 // loop_footer_branch
    %22 = sbr.rel target = $region3
  $region8: #{tpu_custom_call.1} parent=0 // loop_exit
    _
  // While loop
  $region9: #{tpu_custom_call.1} parent=0 // loop_pre_header
    _
  $region10: #{tpu_custom_call.1} parent=0 // loop_header
    %s48 = sphi 0, %s50
    %p49 = scmp.ge.s32.totalorder %s48, %s21
  $region11: #{tpu_custom_call.1} parent=0 // loop_header_branch
    %52 = sbr.rel (%p49) target = $region15
  $region12: #{tpu_custom_call.1} parent=0 // loop_body
    %s53 = sadd.s32 %s15, %s48
    %s54 = sld [smem:[#allocation6 + %s53]]
    %s55 = sshrl.u32 %s48, 3
    %s56 = sand.u32 %s48, 7
    %s57 = smul.u32 %s55, 64
    %s58 = sadd.s32 %s56, %s57
    %s59 = scalar_lea.vmem [#allocation2], %s58
    %s60 = scalar_lea.sflag [#allocation3], %s48
    %s61 = smul.u32 1, 8
    %s62 = sshll.u32 %s61, 4
    %63 = dma.done %s60, %s62
    %s64 = sshrl.u32 %s53, 3
    %s65 = sand.u32 %s53, 7
    %s66 = smul.u32 %s64, 64
    %s67 = sadd.s32 %s65, %s66
    %s68 = smul.addr %s67, 16
    %s69 = scalar_lea.hbm %s3, %s68
    %s70 = scalar_lea.sflag [#allocation4], %s48
    %s72 = sshll.u32 %s59, 4
    %s73 = int_to_ptr.vmem [resolvable:$true] %s72
    %75 = dma.vmem_to_hbm [thread:$0]  %s73, 128, %s69, %s70, 128, 128, 1
  $region13: #{tpu_custom_call.1} parent=0 // loop_footer
    %s50 = sadd.s32 %s48, 1
  $region14: #{tpu_custom_call.1} parent=0 // loop_footer_branch
    %47 = sbr.rel target = $region10
  $region15: #{tpu_custom_call.1} parent=0 // loop_exit
    _
  // While loop
  $region16: #{tpu_custom_call.1} parent=0 // loop_pre_header
    _
  $region17: #{tpu_custom_call.1} parent=0 // loop_header
    %s77 = sphi 0, %s79
    %p78 = scmp.ge.s32.totalorder %s77, %s21
  $region18: #{tpu_custom_call.1} parent=0 // loop_header_branch
    %81 = sbr.rel (%p78) target = $region22
  $region19: #{tpu_custom_call.1} parent=0 // loop_body
    %s82 = scalar_lea.sflag [#allocation4], %s77
    %s83 = smul.u32 1, 8
    %s84 = sshll.u32 %s83, 4
    %85 = dma.done %s82, %s84
  $region20: #{tpu_custom_call.1} parent=0 // loop_footer
    %s79 = sadd.s32 %s77, 1
  $region21: #{tpu_custom_call.1} parent=0 // loop_footer_branch
    %76 = sbr.rel target = $region17
  $region22: #{tpu_custom_call.1} parent=0 // loop_exit
    _
  %86 = vsyncmov [#allocation3]
  %s87 = vpop.sfrf %86
  %p88 = scmp.eq.s32.totalorder %s87, 0
  %p89 = pneg %p88
  %91 = shalt.err (%p89)
  %s92 = scalar_lea.sflag [#allocation3], 1
  %93 = vsyncmov %s92
  %s94 = vpop.sfrf %93
  %p95 = scmp.eq.s32.totalorder %s94, 0
  %p96 = pneg %p95
  %98 = shalt.err (%p96)
  %s99 = scalar_lea.sflag [#allocation3], 2
  %100 = vsyncmov %s99
  %s101 = vpop.sfrf %100
  %p102 = scmp.eq.s32.totalorder %s101, 0
  %p103 = pneg %p102
  %105 = shalt.err (%p103)
  %s106 = scalar_lea.sflag [#allocation3], 3
  %107 = vsyncmov %s106
  %s108 = vpop.sfrf %107
  %p109 = scmp.eq.s32.totalorder %s108, 0
  %p110 = pneg %p109
  %112 = shalt.err (%p110)
  %s113 = scalar_lea.sflag [#allocation3], 4
  %114 = vsyncmov %s113
  %s115 = vpop.sfrf %114
  %p116 = scmp.eq.s32.totalorder %s115, 0
  %p117 = pneg %p116
  %119 = shalt.err (%p117)
  %s120 = scalar_lea.sflag [#allocation3], 5
  %121 = vsyncmov %s120
  %s122 = vpop.sfrf %121
  %p123 = scmp.eq.s32.totalorder %s122, 0
  %p124 = pneg %p123
  %126 = shalt.err (%p124)
  %s127 = scalar_lea.sflag [#allocation3], 6
  %128 = vsyncmov %s127
  %s129 = vpop.sfrf %128
  %p130 = scmp.eq.s32.totalorder %s129, 0
  %p131 = pneg %p130
  %133 = shalt.err (%p131)
  %s134 = scalar_lea.sflag [#allocation3], 7
  %135 = vsyncmov %s134
  %s136 = vpop.sfrf %135
  %p137 = scmp.eq.s32.totalorder %s136, 0
  %p138 = pneg %p137
  %140 = shalt.err (%p138)
  %141 = vsyncmov [#allocation4]
  %s142 = vpop.sfrf %141
  %p143 = scmp.eq.s32.totalorder %s142, 0
  %p144 = pneg %p143
  %146 = shalt.err (%p144)
  %s147 = scalar_lea.sflag [#allocation4], 1
  %148 = vsyncmov %s147
  %s149 = vpop.sfrf %148
  %p150 = scmp.eq.s32.totalorder %s149, 0
  %p151 = pneg %p150
  %153 = shalt.err (%p151)
  %s154 = scalar_lea.sflag [#allocation4], 2
  %155 = vsyncmov %s154
  %s156 = vpop.sfrf %155
  %p157 = scmp.eq.s32.totalorder %s156, 0
  %p158 = pneg %p157
  %160 = shalt.err (%p158)
  %s161 = scalar_lea.sflag [#allocation4], 3
  %162 = vsyncmov %s161
  %s163 = vpop.sfrf %162
  %p164 = scmp.eq.s32.totalorder %s163, 0
  %p165 = pneg %p164
  %167 = shalt.err (%p165)
  %s168 = scalar_lea.sflag [#allocation4], 4
  %169 = vsyncmov %s168
  %s170 = vpop.sfrf %169
  %p171 = scmp.eq.s32.totalorder %s170, 0
  %p172 = pneg %p171
  %174 = shalt.err (%p172)
  %s175 = scalar_lea.sflag [#allocation4], 5
  %176 = vsyncmov %s175
  %s177 = vpop.sfrf %176
  %p178 = scmp.eq.s32.totalorder %s177, 0
  %p179 = pneg %p178
  %181 = shalt.err (%p179)
  %s182 = scalar_lea.sflag [#allocation4], 6
  %183 = vsyncmov %s182
  %s184 = vpop.sfrf %183
  %p185 = scmp.eq.s32.totalorder %s184, 0
  %p186 = pneg %p185
  %188 = shalt.err (%p186)
  %s189 = scalar_lea.sflag [#allocation4], 7
  %190 = vsyncmov %s189
  %s191 = vpop.sfrf %190
  %p192 = scmp.eq.s32.totalorder %s191, 0
  %p193 = pneg %p192
  %195 = shalt.err (%p193)

</llo_original>
